<compile_context>
chip_gen: v7x
topology: tpu7x:2x2x1
jax: 0.10.0
libtpu: 0.0.40
codegen_flags: <defaults>
</compile_context>

<pallas_src>
import jax
import jax.numpy as jnp
from jax.experimental import pallas as pl
from jax.experimental.pallas import tpu as pltpu

PAD = 128          # lane-dense padded width for every layer
EPS = 1e-5
NEG_SLOPE = 0.2


# ----------------------------------------------------------------------------
# Kernel
# ----------------------------------------------------------------------------
def discriminator_kernel(xu_ref, w_ref, v_ref, out_ref):
    # xu_ref : (B, 128)        bf16   padded input
    # w_ref  : (4, 128, 128)   bf16   padded hidden-layer weights (no biases:
    #                                 bias before batch-stat BN is a no-op)
    # v_ref  : (16, 128)       f32    rows 2i / 2i+1 = gamma / beta of BN layer i,
    #                                 row 8 = final 64->1 weight row, row 9 = its bias
    # out_ref: (B, 1)          f32
    B = xu_ref.shape[0]
    inv_b = 1.0 / B

    h = xu_ref[...]                                   # (B, 128) bf16
    for i in range(4):                                # unrolled Linear+BN+LeakyReLU
        pre = jnp.dot(h, w_ref[i], preferred_element_type=jnp.float32)
        gamma = v_ref[2 * i : 2 * i + 1, :]
        beta = v_ref[2 * i + 1 : 2 * i + 2, :]

        # Two-pass centered BN statistics (robust: no E[x^2]-E[x]^2 cancellation),
        # normalize+affine folded into one per-column scale and a per-element FMA.
        mu = jnp.sum(pre, axis=0, keepdims=True) * inv_b
        d = pre - mu
        var = jnp.sum(d * d, axis=0, keepdims=True) * inv_b
        scale = gamma * jax.lax.rsqrt(var + EPS)      # (1,128) per-column work
        hn = d * scale + beta
        hn = jnp.maximum(hn, NEG_SLOPE * hn)          # LeakyReLU(0.2)

        # bf16 only for the next MXU operand; last layer stays f32 (no MXU ahead).
        h = hn if i == 3 else hn.astype(jnp.bfloat16)

    # Final Linear(64 -> 1): lane-wise multiply + cross-lane (XLU) reduction.
    w5_row = v_ref[8:9, :]                            # (1, 128) f32, zero-padded
    b5 = v_ref[9:10, 0:1]                             # (1, 1)   f32
    logits = jnp.sum(h * w5_row, axis=1, keepdims=True) + b5
    # Sigmoid: exp on EUP; exact reciprocal (also EUP) for PyTorch parity.
    out_ref[...] = pl.reciprocal(1.0 + jnp.exp(-logits), approx=False)


# ----------------------------------------------------------------------------
# Parameter construction / packing
# ----------------------------------------------------------------------------
def init_params(key, x_size, u_size):
    """Raw (unpadded) parameters mirroring the PyTorch module layout.

    Linear weights stored [in, out] (PyTorch stores [out, in] and does
    x @ W.T + b -- same math). BN gamma=1, beta=0 (PyTorch defaults).
    """
    dims = [u_size + x_size, 64, 128, 128, 64, 1]
    params = []
    for i in range(5):
        d_in, d_out = dims[i], dims[i + 1]
        key, wk, bk = jax.random.split(key, 3)
        bound = 1.0 / (d_in ** 0.5)
        w = jax.random.uniform(wk, (d_in, d_out), jnp.float32, -bound, bound)
        b = jax.random.uniform(bk, (1, d_out), jnp.float32, -bound, bound)
        params += [w, b]
        if i < 4:
            params += [jnp.ones((1, d_out), jnp.float32),
                       jnp.zeros((1, d_out), jnp.float32)]
    return params


def pack_params(params):
    """Pack the small tensors into one bf16 weight slab + one f32 vector slab.

    Hidden-layer Linear biases are intentionally omitted: each is followed by a
    BatchNorm1d using batch statistics, which cancels the bias exactly.
    """
    (w1, _b1, g1, be1,
     w2, _b2, g2, be2,
     w3, _b3, g3, be3,
     w4, _b4, g4, be4,
     w5, b5) = params

    def pad_w(w):
        out = jnp.zeros((PAD, PAD), jnp.float32)
        return out.at[: w.shape[0], : w.shape[1]].set(w)

    def pad_row(v):
        v = v.reshape(-1)
        out = jnp.zeros((PAD,), jnp.float32)
        return out.at[: v.shape[0]].set(v)

    w_stack = jnp.stack([pad_w(w1), pad_w(w2), pad_w(w3), pad_w(w4)]
                        ).astype(jnp.bfloat16)                      # (4,128,128) bf16

    rows = []
    for g, be in [(g1, be1), (g2, be2), (g3, be3), (g4, be4)]:
        rows += [pad_row(g), pad_row(be)]                           # rows 0..7
    rows.append(pad_row(w5[:, 0]))                                  # row 8: w5
    rows.append(pad_row(b5))                                        # row 9: b5
    while len(rows) < 16:                                           # pad to 16 rows
        rows.append(jnp.zeros((PAD,), jnp.float32))
    v_slab = jnp.stack(rows)                                        # (16,128) f32
    # TODO(synk): fold v_slab into w_stack (bitcast f32->2xbf16 rows) to drop
    # the launch from 3 input DMAs to 2 once the kernel is no longer trivially small.
    return w_stack, v_slab


# ----------------------------------------------------------------------------
# Wrapper (jitted so the pad/cast fuses with the pallas_call -> no extra
# per-call dispatches at small batch).
# ----------------------------------------------------------------------------
@jax.jit
def discriminator_forward(xu, w_stack, v_slab):
    B, F = xu.shape
    # Lane-dense, bf16 input tile (layout plumbing; fused under jit).
    xu_pad = jnp.zeros((B, PAD), jnp.bfloat16).at[:, :F].set(xu.astype(jnp.bfloat16))

    flops = int(2 * B * PAD * PAD * 4        # 4 padded matmuls
                + 10 * B * PAD               # BN + LeakyReLU elementwise
                + 2 * B * PAD)               # final reduction
    transcendentals = int(4 * PAD + 2 * B)   # rsqrt per BN column, exp+rcp per row
    bytes_accessed = int(xu_pad.size * 2 + w_stack.size * 2 + v_slab.size * 4 + B * 4)

    return pl.pallas_call(
        discriminator_kernel,
        out_shape=jax.ShapeDtypeStruct((B, 1), jnp.float32),
        in_specs=[pl.BlockSpec(memory_space=pltpu.MemorySpace.VMEM)] * 3,
        out_specs=pl.BlockSpec(memory_space=pltpu.MemorySpace.VMEM),
        cost_estimate=pl.CostEstimate(flops=flops,
                                      transcendentals=transcendentals,
                                      bytes_accessed=bytes_accessed),
    )(xu_pad, w_stack, v_slab)


# ----------------------------------------------------------------------------
# References
# ----------------------------------------------------------------------------
def reference_forward_f32(xu, params):
    """Pure-f32 reference matching PyTorch training-mode semantics exactly
    (including the hidden-layer biases, which BN cancels mathematically)."""
    (w1, b1, g1, be1, w2, b2, g2, be2, w3, b3, g3, be3, w4, b4, g4, be4,
     w5, b5) = params

    def block(h, w, b, g, be):
        h = h @ w + b
        mu = jnp.mean(h, axis=0, keepdims=True)
        var = jnp.mean((h - mu) ** 2, axis=0, keepdims=True)
        h = (h - mu) / jnp.sqrt(var + EPS) * g + be
        return jnp.where(h > 0, h, NEG_SLOPE * h)

    h = xu.astype(jnp.float32)
    h = block(h, w1, b1, g1, be1)
    h = block(h, w2, b2, g2, be2)
    h = block(h, w3, b3, g3, be3)
    h = block(h, w4, b4, g4, be4)
    return jax.nn.sigmoid(h @ w5 + b5)


def reference_forward_bf16(xu, params):
    """Mirrors the kernel's numerics exactly (bf16 matmul operands, no hidden
    biases, centered two-pass BN, f32 final layer)."""
    (w1, _b1, g1, be1, w2, _b2, g2, be2, w3, _b3, g3, be3, w4, _b4, g4, be4,
     w5, b5) = params

    def block(h, w, g, be):
        pre = jnp.dot(h.astype(jnp.bfloat16), w.astype(jnp.bfloat16),
                      preferred_element_type=jnp.float32)
        n = pre.shape[0]
        mu = jnp.sum(pre, axis=0, keepdims=True) / n
        d = pre - mu
        var = jnp.sum(d * d, axis=0, keepdims=True) / n
        hn = d * (g * jax.lax.rsqrt(var + EPS)) + be
        return jnp.maximum(hn, NEG_SLOPE * hn)

    h = xu.astype(jnp.float32)
    h = block(h, w1, g1, be1)
    h = block(h, w2, g2, be2)
    h = block(h, w3, g3, be3)
    h = block(h, w4, g4, be4)
    return jax.nn.sigmoid(h @ w5 + b5)


# ----------------------------------------------------------------------------
if __name__ == "__main__":
    x_size, u_size, batch = 16, 4, 8
    key = jax.random.PRNGKey(0)
    key, pkey, xkey = jax.random.split(key, 3)

    params = init_params(pkey, x_size, u_size)
    xu = jax.random.normal(xkey, (batch, u_size + x_size), jnp.float32)

    w_stack, v_slab = pack_params(params)
    out = discriminator_forward(xu, w_stack, v_slab)
    out = jax.block_until_ready(out)

    ref16 = reference_forward_bf16(xu, params)   # validates kernel logic
    ref32 = reference_forward_f32(xu, params)    # validates module semantics

    assert out.shape == (batch, 1), out.shape
    err16 = float(jnp.max(jnp.abs(out - ref16)))
    err32 = float(jnp.max(jnp.abs(out - ref32)))
    assert err16 < 5e-3, f"kernel vs bf16 reference mismatch: max abs err = {err16}"
    assert err32 < 3e-2, f"kernel vs f32 reference mismatch: max abs err = {err32}"
    print("KERNEL_OK")
</pallas_src>

<mosaic_0001>
module attributes {stable_mosaic.version = 11 : i64} {
  func.func @discriminator_kernel(%arg0: memref<8x128xbf16, #tpu.memory_space<vmem>>, %arg1: memref<4x128x128xbf16, #tpu.memory_space<vmem>>, %arg2: memref<16x128xf32, #tpu.memory_space<vmem>>, %arg3: memref<8x1xf32, #tpu.memory_space<vmem>>) attributes {dimension_semantics = [], scalar_prefetch = 0 : i64, scratch_operands = 0 : i64, tpu.core_type = #tpu.core_type<tc>} {
    %c0 = arith.constant 0 : index
    %c0_0 = arith.constant 0 : index
    %0 = vector.load %arg0[%c0, %c0_0] : memref<8x128xbf16, #tpu.memory_space<vmem>>, vector<8x128xbf16>
    %c0_1 = arith.constant 0 : index
    %c0_2 = arith.constant 0 : index
    %c0_3 = arith.constant 0 : index
    %1 = vector.load %arg1[%c0_1, %c0_2, %c0_3] : memref<4x128x128xbf16, #tpu.memory_space<vmem>>, vector<1x128x128xbf16>
    %2 = vector.shape_cast %1 : vector<1x128x128xbf16> to vector<128x128xbf16>
    %cst = arith.constant dense<0.000000e+00> : vector<8x128xf32>
    %3 = tpu.matmul %0, %2, %cst {dimension_numbers = #tpu.dot_dimension_numbers<[1], [0], [0], [1], [0, 0, 1, 1], [], []>} : vector<8x128xbf16>, vector<128x128xbf16>, vector<8x128xf32> -> vector<8x128xf32>
    %c0_4 = arith.constant 0 : index
    %c0_5 = arith.constant 0 : index
    %4 = vector.load %arg2[%c0_4, %c0_5] : memref<16x128xf32, #tpu.memory_space<vmem>>, vector<1x128xf32>
    %c1 = arith.constant 1 : index
    %c0_6 = arith.constant 0 : index
    %5 = vector.load %arg2[%c1, %c0_6] : memref<16x128xf32, #tpu.memory_space<vmem>>, vector<1x128xf32>
    %cst_7 = arith.constant dense<0.000000e+00> : vector<128xf32>
    %6 = vector.multi_reduction <add>, %3, %cst_7 [0] : vector<8x128xf32> to vector<128xf32>
    %7 = vector.shape_cast %6 : vector<128xf32> to vector<1x128xf32>
    %cst_8 = arith.constant 1.250000e-01 : f32
    %8 = vector.broadcast %cst_8 : f32 to vector<1x128xf32>
    %9 = arith.mulf %7, %8 : vector<1x128xf32>
    %10 = vector.broadcast %9 : vector<1x128xf32> to vector<8x128xf32>
    %11 = arith.subf %3, %10 : vector<8x128xf32>
    %12 = arith.mulf %11, %11 : vector<8x128xf32>
    %cst_9 = arith.constant dense<0.000000e+00> : vector<128xf32>
    %13 = vector.multi_reduction <add>, %12, %cst_9 [0] : vector<8x128xf32> to vector<128xf32>
    %14 = vector.shape_cast %13 : vector<128xf32> to vector<1x128xf32>
    %cst_10 = arith.constant 1.250000e-01 : f32
    %15 = vector.broadcast %cst_10 : f32 to vector<1x128xf32>
    %16 = arith.mulf %14, %15 : vector<1x128xf32>
    %cst_11 = arith.constant 9.99999974E-6 : f32
    %17 = vector.broadcast %cst_11 : f32 to vector<1x128xf32>
    %18 = arith.addf %16, %17 : vector<1x128xf32>
    %19 = math.rsqrt %18 : vector<1x128xf32>
    %20 = arith.mulf %4, %19 : vector<1x128xf32>
    %21 = vector.broadcast %20 : vector<1x128xf32> to vector<8x128xf32>
    %22 = arith.mulf %11, %21 : vector<8x128xf32>
    %23 = vector.broadcast %5 : vector<1x128xf32> to vector<8x128xf32>
    %24 = arith.addf %22, %23 : vector<8x128xf32>
    %cst_12 = arith.constant 2.000000e-01 : f32
    %25 = vector.broadcast %cst_12 : f32 to vector<8x128xf32>
    %26 = arith.mulf %25, %24 : vector<8x128xf32>
    %27 = arith.maximumf %24, %26 : vector<8x128xf32>
    %28 = arith.truncf %27 : vector<8x128xf32> to vector<8x128xbf16>
    %c1_13 = arith.constant 1 : index
    %c0_14 = arith.constant 0 : index
    %c0_15 = arith.constant 0 : index
    %29 = vector.load %arg1[%c1_13, %c0_14, %c0_15] : memref<4x128x128xbf16, #tpu.memory_space<vmem>>, vector<1x128x128xbf16>
    %30 = vector.shape_cast %29 : vector<1x128x128xbf16> to vector<128x128xbf16>
    %cst_16 = arith.constant dense<0.000000e+00> : vector<8x128xf32>
    %31 = tpu.matmul %28, %30, %cst_16 {dimension_numbers = #tpu.dot_dimension_numbers<[1], [0], [0], [1], [0, 0, 1, 1], [], []>} : vector<8x128xbf16>, vector<128x128xbf16>, vector<8x128xf32> -> vector<8x128xf32>
    %c2 = arith.constant 2 : index
    %c0_17 = arith.constant 0 : index
    %32 = vector.load %arg2[%c2, %c0_17] : memref<16x128xf32, #tpu.memory_space<vmem>>, vector<1x128xf32>
    %c3 = arith.constant 3 : index
    %c0_18 = arith.constant 0 : index
    %33 = vector.load %arg2[%c3, %c0_18] : memref<16x128xf32, #tpu.memory_space<vmem>>, vector<1x128xf32>
    %cst_19 = arith.constant dense<0.000000e+00> : vector<128xf32>
    %34 = vector.multi_reduction <add>, %31, %cst_19 [0] : vector<8x128xf32> to vector<128xf32>
    %35 = vector.shape_cast %34 : vector<128xf32> to vector<1x128xf32>
    %cst_20 = arith.constant 1.250000e-01 : f32
    %36 = vector.broadcast %cst_20 : f32 to vector<1x128xf32>
    %37 = arith.mulf %35, %36 : vector<1x128xf32>
    %38 = vector.broadcast %37 : vector<1x128xf32> to vector<8x128xf32>
    %39 = arith.subf %31, %38 : vector<8x128xf32>
    %40 = arith.mulf %39, %39 : vector<8x128xf32>
    %cst_21 = arith.constant dense<0.000000e+00> : vector<128xf32>
    %41 = vector.multi_reduction <add>, %40, %cst_21 [0] : vector<8x128xf32> to vector<128xf32>
    %42 = vector.shape_cast %41 : vector<128xf32> to vector<1x128xf32>
    %cst_22 = arith.constant 1.250000e-01 : f32
    %43 = vector.broadcast %cst_22 : f32 to vector<1x128xf32>
    %44 = arith.mulf %42, %43 : vector<1x128xf32>
    %cst_23 = arith.constant 9.99999974E-6 : f32
    %45 = vector.broadcast %cst_23 : f32 to vector<1x128xf32>
    %46 = arith.addf %44, %45 : vector<1x128xf32>
    %47 = math.rsqrt %46 : vector<1x128xf32>
    %48 = arith.mulf %32, %47 : vector<1x128xf32>
    %49 = vector.broadcast %48 : vector<1x128xf32> to vector<8x128xf32>
    %50 = arith.mulf %39, %49 : vector<8x128xf32>
    %51 = vector.broadcast %33 : vector<1x128xf32> to vector<8x128xf32>
    %52 = arith.addf %50, %51 : vector<8x128xf32>
    %cst_24 = arith.constant 2.000000e-01 : f32
    %53 = vector.broadcast %cst_24 : f32 to vector<8x128xf32>
    %54 = arith.mulf %53, %52 : vector<8x128xf32>
    %55 = arith.maximumf %52, %54 : vector<8x128xf32>
    %56 = arith.truncf %55 : vector<8x128xf32> to vector<8x128xbf16>
    %c2_25 = arith.constant 2 : index
    %c0_26 = arith.constant 0 : index
    %c0_27 = arith.constant 0 : index
    %57 = vector.load %arg1[%c2_25, %c0_26, %c0_27] : memref<4x128x128xbf16, #tpu.memory_space<vmem>>, vector<1x128x128xbf16>
    %58 = vector.shape_cast %57 : vector<1x128x128xbf16> to vector<128x128xbf16>
    %cst_28 = arith.constant dense<0.000000e+00> : vector<8x128xf32>
    %59 = tpu.matmul %56, %58, %cst_28 {dimension_numbers = #tpu.dot_dimension_numbers<[1], [0], [0], [1], [0, 0, 1, 1], [], []>} : vector<8x128xbf16>, vector<128x128xbf16>, vector<8x128xf32> -> vector<8x128xf32>
    %c4 = arith.constant 4 : index
    %c0_29 = arith.constant 0 : index
    %60 = vector.load %arg2[%c4, %c0_29] : memref<16x128xf32, #tpu.memory_space<vmem>>, vector<1x128xf32>
    %c5 = arith.constant 5 : index
    %c0_30 = arith.constant 0 : index
    %61 = vector.load %arg2[%c5, %c0_30] : memref<16x128xf32, #tpu.memory_space<vmem>>, vector<1x128xf32>
    %cst_31 = arith.constant dense<0.000000e+00> : vector<128xf32>
    %62 = vector.multi_reduction <add>, %59, %cst_31 [0] : vector<8x128xf32> to vector<128xf32>
    %63 = vector.shape_cast %62 : vector<128xf32> to vector<1x128xf32>
    %cst_32 = arith.constant 1.250000e-01 : f32
    %64 = vector.broadcast %cst_32 : f32 to vector<1x128xf32>
    %65 = arith.mulf %63, %64 : vector<1x128xf32>
    %66 = vector.broadcast %65 : vector<1x128xf32> to vector<8x128xf32>
    %67 = arith.subf %59, %66 : vector<8x128xf32>
    %68 = arith.mulf %67, %67 : vector<8x128xf32>
    %cst_33 = arith.constant dense<0.000000e+00> : vector<128xf32>
    %69 = vector.multi_reduction <add>, %68, %cst_33 [0] : vector<8x128xf32> to vector<128xf32>
    %70 = vector.shape_cast %69 : vector<128xf32> to vector<1x128xf32>
    %cst_34 = arith.constant 1.250000e-01 : f32
    %71 = vector.broadcast %cst_34 : f32 to vector<1x128xf32>
    %72 = arith.mulf %70, %71 : vector<1x128xf32>
    %cst_35 = arith.constant 9.99999974E-6 : f32
    %73 = vector.broadcast %cst_35 : f32 to vector<1x128xf32>
    %74 = arith.addf %72, %73 : vector<1x128xf32>
    %75 = math.rsqrt %74 : vector<1x128xf32>
    %76 = arith.mulf %60, %75 : vector<1x128xf32>
    %77 = vector.broadcast %76 : vector<1x128xf32> to vector<8x128xf32>
    %78 = arith.mulf %67, %77 : vector<8x128xf32>
    %79 = vector.broadcast %61 : vector<1x128xf32> to vector<8x128xf32>
    %80 = arith.addf %78, %79 : vector<8x128xf32>
    %cst_36 = arith.constant 2.000000e-01 : f32
    %81 = vector.broadcast %cst_36 : f32 to vector<8x128xf32>
    %82 = arith.mulf %81, %80 : vector<8x128xf32>
    %83 = arith.maximumf %80, %82 : vector<8x128xf32>
    %84 = arith.truncf %83 : vector<8x128xf32> to vector<8x128xbf16>
    %c3_37 = arith.constant 3 : index
    %c0_38 = arith.constant 0 : index
    %c0_39 = arith.constant 0 : index
    %85 = vector.load %arg1[%c3_37, %c0_38, %c0_39] : memref<4x128x128xbf16, #tpu.memory_space<vmem>>, vector<1x128x128xbf16>
    %86 = vector.shape_cast %85 : vector<1x128x128xbf16> to vector<128x128xbf16>
    %cst_40 = arith.constant dense<0.000000e+00> : vector<8x128xf32>
    %87 = tpu.matmul %84, %86, %cst_40 {dimension_numbers = #tpu.dot_dimension_numbers<[1], [0], [0], [1], [0, 0, 1, 1], [], []>} : vector<8x128xbf16>, vector<128x128xbf16>, vector<8x128xf32> -> vector<8x128xf32>
    %c6 = arith.constant 6 : index
    %c0_41 = arith.constant 0 : index
    %88 = vector.load %arg2[%c6, %c0_41] : memref<16x128xf32, #tpu.memory_space<vmem>>, vector<1x128xf32>
    %c7 = arith.constant 7 : index
    %c0_42 = arith.constant 0 : index
    %89 = vector.load %arg2[%c7, %c0_42] : memref<16x128xf32, #tpu.memory_space<vmem>>, vector<1x128xf32>
    %cst_43 = arith.constant dense<0.000000e+00> : vector<128xf32>
    %90 = vector.multi_reduction <add>, %87, %cst_43 [0] : vector<8x128xf32> to vector<128xf32>
    %91 = vector.shape_cast %90 : vector<128xf32> to vector<1x128xf32>
    %cst_44 = arith.constant 1.250000e-01 : f32
    %92 = vector.broadcast %cst_44 : f32 to vector<1x128xf32>
    %93 = arith.mulf %91, %92 : vector<1x128xf32>
    %94 = vector.broadcast %93 : vector<1x128xf32> to vector<8x128xf32>
    %95 = arith.subf %87, %94 : vector<8x128xf32>
    %96 = arith.mulf %95, %95 : vector<8x128xf32>
    %cst_45 = arith.constant dense<0.000000e+00> : vector<128xf32>
    %97 = vector.multi_reduction <add>, %96, %cst_45 [0] : vector<8x128xf32> to vector<128xf32>
    %98 = vector.shape_cast %97 : vector<128xf32> to vector<1x128xf32>
    %cst_46 = arith.constant 1.250000e-01 : f32
    %99 = vector.broadcast %cst_46 : f32 to vector<1x128xf32>
    %100 = arith.mulf %98, %99 : vector<1x128xf32>
    %cst_47 = arith.constant 9.99999974E-6 : f32
    %101 = vector.broadcast %cst_47 : f32 to vector<1x128xf32>
    %102 = arith.addf %100, %101 : vector<1x128xf32>
    %103 = math.rsqrt %102 : vector<1x128xf32>
    %104 = arith.mulf %88, %103 : vector<1x128xf32>
    %105 = vector.broadcast %104 : vector<1x128xf32> to vector<8x128xf32>
    %106 = arith.mulf %95, %105 : vector<8x128xf32>
    %107 = vector.broadcast %89 : vector<1x128xf32> to vector<8x128xf32>
    %108 = arith.addf %106, %107 : vector<8x128xf32>
    %cst_48 = arith.constant 2.000000e-01 : f32
    %109 = vector.broadcast %cst_48 : f32 to vector<8x128xf32>
    %110 = arith.mulf %109, %108 : vector<8x128xf32>
    %111 = arith.maximumf %108, %110 : vector<8x128xf32>
    %c8 = arith.constant 8 : index
    %c0_49 = arith.constant 0 : index
    %112 = vector.load %arg2[%c8, %c0_49] : memref<16x128xf32, #tpu.memory_space<vmem>>, vector<1x128xf32>
    %c9 = arith.constant 9 : index
    %c0_50 = arith.constant 0 : index
    %113 = vector.load %arg2[%c9, %c0_50] : memref<16x128xf32, #tpu.memory_space<vmem>>, vector<1x1xf32>
    %114 = vector.broadcast %112 : vector<1x128xf32> to vector<8x128xf32>
    %115 = arith.mulf %111, %114 : vector<8x128xf32>
    %cst_51 = arith.constant dense<0.000000e+00> : vector<8xf32>
    %116 = vector.multi_reduction <add>, %115, %cst_51 [1] : vector<8x128xf32> to vector<8xf32>
    %117 = vector.shape_cast %116 : vector<8xf32> to vector<8x1xf32>
    %118 = vector.broadcast %113 : vector<1x1xf32> to vector<8x1xf32>
    %119 = arith.addf %117, %118 : vector<8x1xf32>
    %cst_52 = arith.constant 0.000000e+00 : f32
    %120 = vector.broadcast %cst_52 : f32 to vector<8x1xf32>
    %121 = arith.subf %120, %119 : vector<8x1xf32>
    %122 = math.exp %121 : vector<8x1xf32>
    %cst_53 = arith.constant 1.000000e+00 : f32
    %123 = vector.broadcast %cst_53 : f32 to vector<8x1xf32>
    %124 = arith.addf %123, %122 : vector<8x1xf32>
    %125 = tpu.reciprocal %124 : vector<8x1xf32> -> vector<8x1xf32>
    %c0_54 = arith.constant 0 : index
    %c0_55 = arith.constant 0 : index
    %126 = vector.load %arg3[%c0_54, %c0_55] : memref<8x1xf32, #tpu.memory_space<vmem>>, vector<8x1xf32>
    tpu.vector_store %arg3[%c0_54, %c0_55], %125 {strides = array<i32>} : memref<8x1xf32, #tpu.memory_space<vmem>>, vector<8x1xf32>,
    return
  }
}

</mosaic_0001>

<llo_original>
// kernel: discriminator_forward.1
$region0: #{discriminator_forward.1}
  #allocation0 [shape = 'u32[]', space=smem, size = 0x4, offset = 0x4, fixed_abs, tag = 'smem constant byte address 0x4 - core index']
  #allocation1 [shape = 'u32[144,128]{1,0:T(1,128)}', space=vmem, size = 0x12000, scoped, tag = 'internal scratch']
  %s0 = inlined_call_operand.vmem [shape: bf16[8,128], index: 0, kind: input, shape index: {}]
  %s1 = inlined_call_operand.hbm [shape: bf16[4,128,128], index: 1, kind: input, shape index: {}]
  %s2 = inlined_call_operand.vmem [shape: f32[16,128], index: 2, kind: input, shape index: {}]
  %s3 = inlined_call_operand.vmem [shape: f32[8,1], index: 3, kind: output, shape index: {}]
  %s4 = sld [smem:[#allocation0]]
  $region26: #{discriminator_forward.1} parent=0
    _
  %s6 = ssub.s32 1, %s4
  %s7 = scalar_select 0, %s6, %s4
  $region1: #{discriminator_forward.1} parent=0
    #allocation2 [shape = 'u8[131072]{0}', space=vmem, size = 0x20000, scoped, tag = 'input window, operand 1, single buffered']
    #allocation3 [shape = 's32[1]{0}', space=sflag, size = 0x4, scoped, tag = 'scoped memory for discriminator_forward.1']
    %8 = vsyncpa [#allocation3], 0
    // Predicated region
    $region2: #{discriminator_forward.1} parent=1 // pred_check
      _
    $region3: #{discriminator_forward.1} parent=1 // pred_check_branch
      %10 = sbr.rel (0) target = $region5
    $region4: #{discriminator_forward.1} parent=1 // pred_region
      _
    $region5: #{discriminator_forward.1} parent=1 // pred_fallthru
      _
    // Predicated region
    $region6: #{discriminator_forward.1} parent=1 // pred_check
      _
    $region7: #{discriminator_forward.1} parent=1 // pred_check_branch
      %12 = sbr.rel (0) target = $region9
    $region8: #{discriminator_forward.1} parent=1 // pred_region
      %s14 = ssub.s32 4096, 4096
      %15 = vsyncadd [#allocation3], %s14
      %s16 = sshll.u32 [#allocation2], 4
      %s17 = int_to_ptr.vmem [resolvable:$true] %s16
      %22 = dma.hbm_to_vmem [thread:$0]  %s1, 4096, %s17, [#allocation3], 64, 64, 4
    $region9: #{discriminator_forward.1} parent=1 // pred_fallthru
      _
    // Predicated region
    $region10: #{discriminator_forward.1} parent=1 // pred_check
      _
    $region11: #{discriminator_forward.1} parent=1 // pred_check_branch
      %24 = sbr.rel (0) target = $region13
    $region12: #{discriminator_forward.1} parent=1 // pred_region
      _
    $region13: #{discriminator_forward.1} parent=1 // pred_fallthru
      _
    // Predicated region
    $region14: #{discriminator_forward.1} parent=1 // pred_check
      _
    $region15: #{discriminator_forward.1} parent=1 // pred_check_branch
      %26 = sbr.rel (0) target = $region17
    $region16: #{discriminator_forward.1} parent=1 // pred_region
      %27 = dma.done [#allocation3], 4096
    $region17: #{discriminator_forward.1} parent=1 // pred_fallthru
      _
    %v29 = vld [vmem:[%s0] sm:$0xf]
    %v30 = vld [vmem:[#allocation2] sm:$0xf]
    %v31 = vld [vmem:[#allocation2 + $0x4] sm:$0xf]
    %v32 = vld [vmem:[#allocation2 + $0x8] sm:$0xf]
    %v33 = vld [vmem:[#allocation2 + $0xc] sm:$0xf]
    %v34 = vld [vmem:[#allocation2 + $0x10] sm:$0xf]
    %v35 = vld [vmem:[#allocation2 + $0x14] sm:$0xf]
    %v36 = vld [vmem:[#allocation2 + $0x18] sm:$0xf]
    %v37 = vld [vmem:[#allocation2 + $0x1c] sm:$0xf]
    %v38 = vld [vmem:[#allocation2 + $0x20] sm:$0xf]
    %v39 = vld [vmem:[#allocation2 + $0x24] sm:$0xf]
    %v40 = vld [vmem:[#allocation2 + $0x28] sm:$0xf]
    %v41 = vld [vmem:[#allocation2 + $0x2c] sm:$0xf]
    %v42 = vld [vmem:[#allocation2 + $0x30] sm:$0xf]
    %v43 = vld [vmem:[#allocation2 + $0x34] sm:$0xf]
    %v44 = vld [vmem:[#allocation2 + $0x38] sm:$0xf]
    %v45 = vld [vmem:[#allocation2 + $0x3c] sm:$0xf]
    %v62 = vunpack.c.l.b16 %v30
    %v63 = vunpack.c.l.b16 %v31
    %v64 = vunpack.c.l.b16 %v32
    %v65 = vunpack.c.l.b16 %v33
    %v66 = vunpack.c.l.b16 %v34
    %v67 = vunpack.c.l.b16 %v35
    %v68 = vunpack.c.l.b16 %v36
    %v69 = vunpack.c.l.b16 %v37
    %v70 = vunpack.c.l.b16 %v38
    %v71 = vunpack.c.l.b16 %v39
    %v72 = vunpack.c.l.b16 %v40
    %v73 = vunpack.c.l.b16 %v41
    %v74 = vunpack.c.l.b16 %v42
    %v75 = vunpack.c.l.b16 %v43
    %v76 = vunpack.c.l.b16 %v44
    %v77 = vunpack.c.l.b16 %v45
    %v78 = vpack.c.b16 %v63, %v62
    %v79 = vpack.c.b16 %v65, %v64
    %v80 = vpack.c.b16 %v67, %v66
    %v81 = vpack.c.b16 %v69, %v68
    %v82 = vpack.c.b16 %v71, %v70
    %v83 = vpack.c.b16 %v73, %v72
    %v84 = vpack.c.b16 %v75, %v74
    %v85 = vpack.c.b16 %v77, %v76
    %94 = vmatprep.subr.bf16.mxu0 0
    %95 = vmatpush1.bf16.msra.mxu0 %v78
    %96 = vmatprep.subr.bf16.mxu0 0
    %97 = vmatpush1.bf16.msra.mxu0 %v79
    %98 = vmatprep.subr.bf16.mxu0 0
    %99 = vmatpush1.bf16.msra.mxu0 %v80
    %100 = vmatprep.subr.bf16.mxu0 0
    %101 = vmatpush1.bf16.msra.mxu0 %v81
    %102 = vmatprep.subr.bf16.mxu0 0
    %103 = vmatpush1.bf16.msra.mxu0 %v82
    %104 = vmatprep.subr.bf16.mxu0 0
    %105 = vmatpush1.bf16.msra.mxu0 %v83
    %106 = vmatprep.subr.bf16.mxu0 0
    %107 = vmatpush1.bf16.msra.mxu0 %v84
    %108 = vmatprep.subr.bf16.mxu0 0
    %109 = vmatpush1.bf16.msra.mxu0 %v85
    %110 = vmatprep.subr.bf16.mxu0 0
    %111 = vmatpush1.bf16.msra.mxu0 0
    %112 = vmatprep.subr.bf16.mxu0 0
    %113 = vmatpush1.bf16.msra.mxu0 0
    %114 = vmatprep.subr.bf16.mxu0 0
    %115 = vmatpush1.bf16.msra.mxu0 0
    %116 = vmatprep.subr.bf16.mxu0 0
    %117 = vmatpush1.bf16.msra.mxu0 0
    %118 = vmatprep.subr.bf16.mxu0 0
    %119 = vmatpush1.bf16.msra.mxu0 0
    %120 = vmatprep.subr.bf16.mxu0 0
    %121 = vmatpush1.bf16.msra.mxu0 0
    %122 = vmatprep.subr.bf16.mxu0 0
    %123 = vmatpush1.bf16.msra.mxu0 0
    %124 = vmatprep.subr.bf16.mxu0 0
    %125 = vmatpush1.bf16.msra.mxu0 0
    %126 = vmatprep.mubr.bf16.mxu0 0
    %127 = vmatmul.mubr.bf16.gmra.mrb[0].mxu0 %v29
    %v128 = vpop.f32.mrb[0].mxu0
    %v129 = vadd.f32 0.0, %v128
    %v130 = vpop.f32.mrb[0].mxu0
    %v131 = vpop.f32.mrb[0].mxu0
    %v132 = vpop.f32.mrb[0].mxu0
    %133 = vdwg.mxu0
    %v134 = vld [vmem:[%s2] sm:$0x1]
    %v135 = vld [vmem:[%s2 + $0x1] sm:$0x1]
    %v136 = vrot.slane %v129, 4
    %v137 = vadd.f32 %v129, %v136
    %v138 = vrot.slane %v137, 2
    %v139 = vadd.f32 %v137, %v138
    %v140 = vrot.slane %v139, 1
    %v141 = vadd.f32 %v139, %v140
    %v142 = vmul.f32 %v141, 0.125
    %v143 = vsub.f32 %v129, %v142
    %v144 = vmul.f32 %v143, %v143
    %v145 = vrot.slane %v144, 4
    %v146 = vadd.f32 %v144, %v145
    %v147 = vrot.slane %v146, 2
    %v148 = vadd.f32 %v146, %v147
    %v149 = vrot.slane %v148, 1
    %v150 = vadd.f32 %v148, %v149
    %v151 = vmul.f32 %v150, 0.125
    %v152 = vadd.f32 %v151, 1e-05
    %v153 = vrsqrt.pop %v152
    %v154 = vmul.f32 %v134, %v153
    %v155 = vlaneseq
    %v156 = vshrl.u32 %v155, 7
    %v157 = vsub.s32 0, %v156
    %v158 = vrot.slane %v154, %v157
    %v159 = vmul.f32 %v143, %v158
    %v160 = vlaneseq
    %v161 = vshrl.u32 %v160, 7
    %v162 = vsub.s32 0, %v161
    %v163 = vrot.slane %v135, %v162
    %v164 = vadd.f32 %v159, %v163
    %v165 = vmul.f32 %v164, 0.2
    %v166 = vmax.f32 %v164, %v165
    %v167 = vpack.c.bf16 %v166, %v166
    %s168 = scalar_lea.vmem [#allocation2], 64
    %v169 = vld [vmem:[%s168] sm:$0xf]
    %v170 = vld [vmem:[%s168 + $0x4] sm:$0xf]
    %v171 = vld [vmem:[%s168 + $0x8] sm:$0xf]
    %v172 = vld [vmem:[%s168 + $0xc] sm:$0xf]
    %v173 = vld [vmem:[%s168 + $0x10] sm:$0xf]
    %v174 = vld [vmem:[%s168 + $0x14] sm:$0xf]
    %v175 = vld [vmem:[%s168 + $0x18] sm:$0xf]
    %v176 = vld [vmem:[%s168 + $0x1c] sm:$0xf]
    %v177 = vld [vmem:[%s168 + $0x20] sm:$0xf]
    %v178 = vld [vmem:[%s168 + $0x24] sm:$0xf]
    %v179 = vld [vmem:[%s168 + $0x28] sm:$0xf]
    %v180 = vld [vmem:[%s168 + $0x2c] sm:$0xf]
    %v181 = vld [vmem:[%s168 + $0x30] sm:$0xf]
    %v182 = vld [vmem:[%s168 + $0x34] sm:$0xf]
    %v183 = vld [vmem:[%s168 + $0x38] sm:$0xf]
    %v184 = vld [vmem:[%s168 + $0x3c] sm:$0xf]
    %v201 = vunpack.c.l.b16 %v169
    %v202 = vunpack.c.l.b16 %v170
    %v203 = vunpack.c.l.b16 %v171
    %v204 = vunpack.c.l.b16 %v172
    %v205 = vunpack.c.l.b16 %v173
    %v206 = vunpack.c.l.b16 %v174
    %v207 = vunpack.c.l.b16 %v175
    %v208 = vunpack.c.l.b16 %v176
    %v209 = vunpack.c.l.b16 %v177
    %v210 = vunpack.c.l.b16 %v178
    %v211 = vunpack.c.l.b16 %v179
    %v212 = vunpack.c.l.b16 %v180
    %v213 = vunpack.c.l.b16 %v181
    %v214 = vunpack.c.l.b16 %v182
    %v215 = vunpack.c.l.b16 %v183
    %v216 = vunpack.c.l.b16 %v184
    %v217 = vpack.c.b16 %v202, %v201
    %v218 = vpack.c.b16 %v204, %v203
    %v219 = vpack.c.b16 %v206, %v205
    %v220 = vpack.c.b16 %v208, %v207
    %v221 = vpack.c.b16 %v210, %v209
    %v222 = vpack.c.b16 %v212, %v211
    %v223 = vpack.c.b16 %v214, %v213
    %v224 = vpack.c.b16 %v216, %v215
    %233 = vmatprep.subr.bf16.mxu0 0
    %234 = vmatpush1.bf16.msra.mxu0 %v217
    %235 = vmatprep.subr.bf16.mxu0 0
    %236 = vmatpush1.bf16.msra.mxu0 %v218
    %237 = vmatprep.subr.bf16.mxu0 0
    %238 = vmatpush1.bf16.msra.mxu0 %v219
    %239 = vmatprep.subr.bf16.mxu0 0
    %240 = vmatpush1.bf16.msra.mxu0 %v220
    %241 = vmatprep.subr.bf16.mxu0 0
    %242 = vmatpush1.bf16.msra.mxu0 %v221
    %243 = vmatprep.subr.bf16.mxu0 0
    %244 = vmatpush1.bf16.msra.mxu0 %v222
    %245 = vmatprep.subr.bf16.mxu0 0
    %246 = vmatpush1.bf16.msra.mxu0 %v223
    %247 = vmatprep.subr.bf16.mxu0 0
    %248 = vmatpush1.bf16.msra.mxu0 %v224
    %249 = vmatprep.subr.bf16.mxu0 0
    %250 = vmatpush1.bf16.msra.mxu0 0
    %251 = vmatprep.subr.bf16.mxu0 0
    %252 = vmatpush1.bf16.msra.mxu0 0
    %253 = vmatprep.subr.bf16.mxu0 0
    %254 = vmatpush1.bf16.msra.mxu0 0
    %255 = vmatprep.subr.bf16.mxu0 0
    %256 = vmatpush1.bf16.msra.mxu0 0
    %257 = vmatprep.subr.bf16.mxu0 0
    %258 = vmatpush1.bf16.msra.mxu0 0
    %259 = vmatprep.subr.bf16.mxu0 0
    %260 = vmatpush1.bf16.msra.mxu0 0
    %261 = vmatprep.subr.bf16.mxu0 0
    %262 = vmatpush1.bf16.msra.mxu0 0
    %263 = vmatprep.subr.bf16.mxu0 0
    %264 = vmatpush1.bf16.msra.mxu0 0
    %265 = vmatprep.mubr.bf16.mxu0 0
    %266 = vmatmul.mubr.bf16.gmra.mrb[0].mxu0 %v167
    %v267 = vpop.f32.mrb[0].mxu0
    %v268 = vadd.f32 0.0, %v267
    %v269 = vpop.f32.mrb[0].mxu0
    %v270 = vpop.f32.mrb[0].mxu0
    %v271 = vpop.f32.mrb[0].mxu0
    %272 = vdwg.mxu0
    %v273 = vld [vmem:[%s2 + $0x2] sm:$0x1]
    %v274 = vld [vmem:[%s2 + $0x3] sm:$0x1]
    %v275 = vrot.slane %v268, 4
    %v276 = vadd.f32 %v268, %v275
    %v277 = vrot.slane %v276, 2
    %v278 = vadd.f32 %v276, %v277
    %v279 = vrot.slane %v278, 1
    %v280 = vadd.f32 %v278, %v279
    %v281 = vmul.f32 %v280, 0.125
    %v282 = vsub.f32 %v268, %v281
    %v283 = vmul.f32 %v282, %v282
    %v284 = vrot.slane %v283, 4
    %v285 = vadd.f32 %v283, %v284
    %v286 = vrot.slane %v285, 2
    %v287 = vadd.f32 %v285, %v286
    %v288 = vrot.slane %v287, 1
    %v289 = vadd.f32 %v287, %v288
    %v290 = vmul.f32 %v289, 0.125
    %v291 = vadd.f32 %v290, 1e-05
    %v292 = vrsqrt.pop %v291
    %v293 = vmul.f32 %v273, %v292
    %v294 = vlaneseq
    %v295 = vshrl.u32 %v294, 7
    %v296 = vsub.s32 0, %v295
    %v297 = vrot.slane %v293, %v296
    %v298 = vmul.f32 %v282, %v297
    %v299 = vlaneseq
    %v300 = vshrl.u32 %v299, 7
    %v301 = vsub.s32 0, %v300
    %v302 = vrot.slane %v274, %v301
    %v303 = vadd.f32 %v298, %v302
    %v304 = vmul.f32 %v303, 0.2
    %v305 = vmax.f32 %v303, %v304
    %v306 = vpack.c.bf16 %v305, %v305
    %s307 = scalar_lea.vmem [#allocation2], 128
    %v308 = vld [vmem:[%s307] sm:$0xf]
    %v309 = vld [vmem:[%s307 + $0x4] sm:$0xf]
    %v310 = vld [vmem:[%s307 + $0x8] sm:$0xf]
    %v311 = vld [vmem:[%s307 + $0xc] sm:$0xf]
    %v312 = vld [vmem:[%s307 + $0x10] sm:$0xf]
    %v313 = vld [vmem:[%s307 + $0x14] sm:$0xf]
    %v314 = vld [vmem:[%s307 + $0x18] sm:$0xf]
    %v315 = vld [vmem:[%s307 + $0x1c] sm:$0xf]
    %v316 = vld [vmem:[%s307 + $0x20] sm:$0xf]
    %v317 = vld [vmem:[%s307 + $0x24] sm:$0xf]
    %v318 = vld [vmem:[%s307 + $0x28] sm:$0xf]
    %v319 = vld [vmem:[%s307 + $0x2c] sm:$0xf]
    %v320 = vld [vmem:[%s307 + $0x30] sm:$0xf]
    %v321 = vld [vmem:[%s307 + $0x34] sm:$0xf]
    %v322 = vld [vmem:[%s307 + $0x38] sm:$0xf]
    %v323 = vld [vmem:[%s307 + $0x3c] sm:$0xf]
    %v340 = vunpack.c.l.b16 %v308
    %v341 = vunpack.c.l.b16 %v309
    %v342 = vunpack.c.l.b16 %v310
    %v343 = vunpack.c.l.b16 %v311
    %v344 = vunpack.c.l.b16 %v312
    %v345 = vunpack.c.l.b16 %v313
    %v346 = vunpack.c.l.b16 %v314
    %v347 = vunpack.c.l.b16 %v315
    %v348 = vunpack.c.l.b16 %v316
    %v349 = vunpack.c.l.b16 %v317
    %v350 = vunpack.c.l.b16 %v318
    %v351 = vunpack.c.l.b16 %v319
    %v352 = vunpack.c.l.b16 %v320
    %v353 = vunpack.c.l.b16 %v321
    %v354 = vunpack.c.l.b16 %v322
    %v355 = vunpack.c.l.b16 %v323
    %v356 = vpack.c.b16 %v341, %v340
    %v357 = vpack.c.b16 %v343, %v342
    %v358 = vpack.c.b16 %v345, %v344
    %v359 = vpack.c.b16 %v347, %v346
    %v360 = vpack.c.b16 %v349, %v348
    %v361 = vpack.c.b16 %v351, %v350
    %v362 = vpack.c.b16 %v353, %v352
    %v363 = vpack.c.b16 %v355, %v354
    %372 = vmatprep.subr.bf16.mxu0 0
    %373 = vmatpush1.bf16.msra.mxu0 %v356
    %374 = vmatprep.subr.bf16.mxu0 0
    %375 = vmatpush1.bf16.msra.mxu0 %v357
    %376 = vmatprep.subr.bf16.mxu0 0
    %377 = vmatpush1.bf16.msra.mxu0 %v358
    %378 = vmatprep.subr.bf16.mxu0 0
    %379 = vmatpush1.bf16.msra.mxu0 %v359
    %380 = vmatprep.subr.bf16.mxu0 0
    %381 = vmatpush1.bf16.msra.mxu0 %v360
    %382 = vmatprep.subr.bf16.mxu0 0
    %383 = vmatpush1.bf16.msra.mxu0 %v361
    %384 = vmatprep.subr.bf16.mxu0 0
    %385 = vmatpush1.bf16.msra.mxu0 %v362
    %386 = vmatprep.subr.bf16.mxu0 0
    %387 = vmatpush1.bf16.msra.mxu0 %v363
    %388 = vmatprep.subr.bf16.mxu0 0
    %389 = vmatpush1.bf16.msra.mxu0 0
    %390 = vmatprep.subr.bf16.mxu0 0
    %391 = vmatpush1.bf16.msra.mxu0 0
    %392 = vmatprep.subr.bf16.mxu0 0
    %393 = vmatpush1.bf16.msra.mxu0 0
    %394 = vmatprep.subr.bf16.mxu0 0
    %395 = vmatpush1.bf16.msra.mxu0 0
    %396 = vmatprep.subr.bf16.mxu0 0
    %397 = vmatpush1.bf16.msra.mxu0 0
    %398 = vmatprep.subr.bf16.mxu0 0
    %399 = vmatpush1.bf16.msra.mxu0 0
    %400 = vmatprep.subr.bf16.mxu0 0
    %401 = vmatpush1.bf16.msra.mxu0 0
    %402 = vmatprep.subr.bf16.mxu0 0
    %403 = vmatpush1.bf16.msra.mxu0 0
    %404 = vmatprep.mubr.bf16.mxu0 0
    %405 = vmatmul.mubr.bf16.gmra.mrb[0].mxu0 %v306
    %v406 = vpop.f32.mrb[0].mxu0
    %v407 = vadd.f32 0.0, %v406
    %v408 = vpop.f32.mrb[0].mxu0
    %v409 = vpop.f32.mrb[0].mxu0
    %v410 = vpop.f32.mrb[0].mxu0
    %411 = vdwg.mxu0
    %v412 = vld [vmem:[%s2 + $0x4] sm:$0x1]
    %v413 = vld [vmem:[%s2 + $0x5] sm:$0x1]
    %v414 = vrot.slane %v407, 4
    %v415 = vadd.f32 %v407, %v414
    %v416 = vrot.slane %v415, 2
    %v417 = vadd.f32 %v415, %v416
    %v418 = vrot.slane %v417, 1
    %v419 = vadd.f32 %v417, %v418
    %v420 = vmul.f32 %v419, 0.125
    %v421 = vsub.f32 %v407, %v420
    %v422 = vmul.f32 %v421, %v421
    %v423 = vrot.slane %v422, 4
    %v424 = vadd.f32 %v422, %v423
    %v425 = vrot.slane %v424, 2
    %v426 = vadd.f32 %v424, %v425
    %v427 = vrot.slane %v426, 1
    %v428 = vadd.f32 %v426, %v427
    %v429 = vmul.f32 %v428, 0.125
    %v430 = vadd.f32 %v429, 1e-05
    %v431 = vrsqrt.pop %v430
    %v432 = vmul.f32 %v412, %v431
    %v433 = vlaneseq
    %v434 = vshrl.u32 %v433, 7
    %v435 = vsub.s32 0, %v434
    %v436 = vrot.slane %v432, %v435
    %v437 = vmul.f32 %v421, %v436
    %v438 = vlaneseq
    %v439 = vshrl.u32 %v438, 7
    %v440 = vsub.s32 0, %v439
    %v441 = vrot.slane %v413, %v440
    %v442 = vadd.f32 %v437, %v441
    %v443 = vmul.f32 %v442, 0.2
    %v444 = vmax.f32 %v442, %v443
    %v445 = vpack.c.bf16 %v444, %v444
    %s446 = scalar_lea.vmem [#allocation2], 192
    %v447 = vld [vmem:[%s446] sm:$0xf]
    %v448 = vld [vmem:[%s446 + $0x4] sm:$0xf]
    %v449 = vld [vmem:[%s446 + $0x8] sm:$0xf]
    %v450 = vld [vmem:[%s446 + $0xc] sm:$0xf]
    %v451 = vld [vmem:[%s446 + $0x10] sm:$0xf]
    %v452 = vld [vmem:[%s446 + $0x14] sm:$0xf]
    %v453 = vld [vmem:[%s446 + $0x18] sm:$0xf]
    %v454 = vld [vmem:[%s446 + $0x1c] sm:$0xf]
    %v455 = vld [vmem:[%s446 + $0x20] sm:$0xf]
    %v456 = vld [vmem:[%s446 + $0x24] sm:$0xf]
    %v457 = vld [vmem:[%s446 + $0x28] sm:$0xf]
    %v458 = vld [vmem:[%s446 + $0x2c] sm:$0xf]
    %v459 = vld [vmem:[%s446 + $0x30] sm:$0xf]
    %v460 = vld [vmem:[%s446 + $0x34] sm:$0xf]
    %v461 = vld [vmem:[%s446 + $0x38] sm:$0xf]
    %v462 = vld [vmem:[%s446 + $0x3c] sm:$0xf]
    %v479 = vunpack.c.l.b16 %v447
    %v480 = vunpack.c.l.b16 %v448
    %v481 = vunpack.c.l.b16 %v449
    %v482 = vunpack.c.l.b16 %v450
    %v483 = vunpack.c.l.b16 %v451
    %v484 = vunpack.c.l.b16 %v452
    %v485 = vunpack.c.l.b16 %v453
    %v486 = vunpack.c.l.b16 %v454
    %v487 = vunpack.c.l.b16 %v455
    %v488 = vunpack.c.l.b16 %v456
    %v489 = vunpack.c.l.b16 %v457
    %v490 = vunpack.c.l.b16 %v458
    %v491 = vunpack.c.l.b16 %v459
    %v492 = vunpack.c.l.b16 %v460
    %v493 = vunpack.c.l.b16 %v461
    %v494 = vunpack.c.l.b16 %v462
    %v495 = vpack.c.b16 %v480, %v479
    %v496 = vpack.c.b16 %v482, %v481
    %v497 = vpack.c.b16 %v484, %v483
    %v498 = vpack.c.b16 %v486, %v485
    %v499 = vpack.c.b16 %v488, %v487
    %v500 = vpack.c.b16 %v490, %v489
    %v501 = vpack.c.b16 %v492, %v491
    %v502 = vpack.c.b16 %v494, %v493
    %511 = vmatprep.subr.bf16.mxu0 0
    %512 = vmatpush1.bf16.msra.mxu0 %v495
    %513 = vmatprep.subr.bf16.mxu0 0
    %514 = vmatpush1.bf16.msra.mxu0 %v496
    %515 = vmatprep.subr.bf16.mxu0 0
    %516 = vmatpush1.bf16.msra.mxu0 %v497
    %517 = vmatprep.subr.bf16.mxu0 0
    %518 = vmatpush1.bf16.msra.mxu0 %v498
    %519 = vmatprep.subr.bf16.mxu0 0
    %520 = vmatpush1.bf16.msra.mxu0 %v499
    %521 = vmatprep.subr.bf16.mxu0 0
    %522 = vmatpush1.bf16.msra.mxu0 %v500
    %523 = vmatprep.subr.bf16.mxu0 0
    %524 = vmatpush1.bf16.msra.mxu0 %v501
    %525 = vmatprep.subr.bf16.mxu0 0
    %526 = vmatpush1.bf16.msra.mxu0 %v502
    %527 = vmatprep.subr.bf16.mxu0 0
    %528 = vmatpush1.bf16.msra.mxu0 0
    %529 = vmatprep.subr.bf16.mxu0 0
    %530 = vmatpush1.bf16.msra.mxu0 0
    %531 = vmatprep.subr.bf16.mxu0 0
    %532 = vmatpush1.bf16.msra.mxu0 0
    %533 = vmatprep.subr.bf16.mxu0 0
    %534 = vmatpush1.bf16.msra.mxu0 0
    %535 = vmatprep.subr.bf16.mxu0 0
    %536 = vmatpush1.bf16.msra.mxu0 0
    %537 = vmatprep.subr.bf16.mxu0 0
    %538 = vmatpush1.bf16.msra.mxu0 0
    %539 = vmatprep.subr.bf16.mxu0 0
    %540 = vmatpush1.bf16.msra.mxu0 0
    %541 = vmatprep.subr.bf16.mxu0 0
    %542 = vmatpush1.bf16.msra.mxu0 0
    %543 = vmatprep.mubr.bf16.mxu0 0
    %544 = vmatmul.mubr.bf16.gmra.mrb[0].mxu0 %v445
    %v545 = vpop.f32.mrb[0].mxu0
    %v546 = vadd.f32 0.0, %v545
    %v547 = vpop.f32.mrb[0].mxu0
    %v548 = vpop.f32.mrb[0].mxu0
    %v549 = vpop.f32.mrb[0].mxu0
    %550 = vdwg.mxu0
    %v551 = vld [vmem:[%s2 + $0x6] sm:$0x1]
    %v552 = vld [vmem:[%s2 + $0x7] sm:$0x1]
    %v553 = vrot.slane %v546, 4
    %v554 = vadd.f32 %v546, %v553
    %v555 = vrot.slane %v554, 2
    %v556 = vadd.f32 %v554, %v555
    %v557 = vrot.slane %v556, 1
    %v558 = vadd.f32 %v556, %v557
    %v559 = vmul.f32 %v558, 0.125
    %v560 = vsub.f32 %v546, %v559
    %v561 = vmul.f32 %v560, %v560
    %v562 = vrot.slane %v561, 4
    %v563 = vadd.f32 %v561, %v562
    %v564 = vrot.slane %v563, 2
    %v565 = vadd.f32 %v563, %v564
    %v566 = vrot.slane %v565, 1
    %v567 = vadd.f32 %v565, %v566
    %v568 = vmul.f32 %v567, 0.125
    %v569 = vadd.f32 %v568, 1e-05
    %v570 = vrsqrt.pop %v569
    %v571 = vmul.f32 %v551, %v570
    %v572 = vlaneseq
    %v573 = vshrl.u32 %v572, 7
    %v574 = vsub.s32 0, %v573
    %v575 = vrot.slane %v571, %v574
    %v576 = vmul.f32 %v560, %v575
    %v577 = vlaneseq
    %v578 = vshrl.u32 %v577, 7
    %v579 = vsub.s32 0, %v578
    %v580 = vrot.slane %v552, %v579
    %v581 = vadd.f32 %v576, %v580
    %v582 = vmul.f32 %v581, 0.2
    %v583 = vmax.f32 %v581, %v582
    %v584 = vld [vmem:[%s2 + $0x8] sm:$0x1]
    %v585 = vld [vmem:[%s2 + $0x9] sm:$0x1]
    %v586 = vlaneseq
    %v587 = vshrl.u32 %v586, 7
    %v588 = vsub.s32 0, %v587
    %v589 = vrot.slane %v584, %v588
    %v590 = vmul.f32 %v583, %v589
    %591 = vadd.xlane.f32.xlu0 %v590
    %v592 = vpop.xlane.xlu0 %591
    %v593 = vlaneseq
    %v594 = vshrl.u32 %v593, 7
    %v595 = vsub.s32 0, %v594
    %v596 = vrot.slane %v585, %v595
    %v597 = vadd.f32 %v592, %v596
    %v598 = vsub.f32 0.0, %v597
    %v599 = vmul.f32 %v598, 1.442695
    %v600 = vpow.pop %v599
    %v601 = vadd.f32 %v600, 1.0
    %v602 = vrcp.pop %v601
    %vm603 = vcmask 7168
    %604 = vst.msk [vmem:[%s3] sm:$0xff] %vm603, %v602
    // Predicated region
    $region18: #{discriminator_forward.1} parent=1 // pred_check
      _
    $region19: #{discriminator_forward.1} parent=1 // pred_check_branch
      %606 = sbr.rel (0) target = $region21
    $region20: #{discriminator_forward.1} parent=1 // pred_region
      _
    $region21: #{discriminator_forward.1} parent=1 // pred_fallthru
      _
    // Predicated region
    $region22: #{discriminator_forward.1} parent=1 // pred_check
      _
    $region23: #{discriminator_forward.1} parent=1 // pred_check_branch
      %608 = sbr.rel (0) target = $region25
    $region24: #{discriminator_forward.1} parent=1 // pred_region
      _
    $region25: #{discriminator_forward.1} parent=1 // pred_fallthru
      _
    %609 = vsyncpa [#allocation3], 1

</llo_original>
